<compile_context>
chip_gen: v5e
topology: v5e:2x2
jax: 0.10.0
libtpu: 0.0.40
codegen_flags: <defaults>
</compile_context>

<pallas_src>
import numpy as np

import jax
import jax.numpy as jnp
from jax.experimental import pallas as pl
from jax.experimental.pallas import tpu as pltpu


def _round_up(x, m):
    return (x + m - 1) // m * m


# ----------------------------------------------------------------------------
# Pallas kernel: one K-folded MXU matmul + bias + ReLU per grid step
# ----------------------------------------------------------------------------
def _engine_conv_kernel(x_ref, w_ref, b_ref, o_ref):
    # x_ref: (TM, K)   f32  K-folded activation rows (TM = b_img*H output rows)
    # w_ref: (K, WCO)  bf16 banded, K-folded conv weights (constant across steps)
    # b_ref: (1, WCO)  f32  bias tiled over W (lane-dense)
    # o_ref: (TM, WCO) f32  output rows; WCO = W*C_out, a multiple of 128 lanes
    lhs = x_ref[...].astype(jnp.bfloat16)            # f32 -> bf16 cast in-kernel (VPU)
    acc = jnp.dot(lhs, w_ref[...],
                  preferred_element_type=jnp.float32)  # single MXU dot, f32 accumulate
    acc = acc + b_ref[...]                            # bias epilogue (broadcast (1, WCO))
    o_ref[...] = jnp.maximum(acc, 0.0).astype(o_ref.dtype)


# ----------------------------------------------------------------------------
# Engine "build" step: reformat conv weights into a K-folded, banded, lane-dense
# matrix (analogous to TensorRT weight reformatting at engine build time).
#   B[kh*KIN + (wi+kw)*C_in + c, wi*C_out + co] = w[co, c, kh, kw]
# ----------------------------------------------------------------------------
def _prepack_engine(weight, bias, W):
    w = np.asarray(weight, dtype=np.float32)          # (C_out, C_in, KH, KW) torch layout
    b = np.asarray(bias, dtype=np.float32)            # (C_out,)
    C_out, C_in, KH, KW = w.shape
    pad = (KW - 1) // 2
    WP = W + 2 * pad                                  # padded width incl. halo
    KIN = WP * C_in                                   # folded (width+halo, C_in) extent
    K = KH * KIN                                      # true contraction extent (no lane pad)
    wco = W * C_out
    wco_pad = _round_up(wco, 128)                     # lane-dense output width

    B = np.zeros((K, wco_pad), dtype=np.float32)
    for kh in range(KH):
        for kw in range(KW):
            blk = w[:, :, kh, kw].T                   # (C_in, C_out)
            for wi in range(W):
                r0 = kh * KIN + (wi + kw) * C_in
                c0 = wi * C_out
                B[r0:r0 + C_in, c0:c0 + C_out] = blk

    bias_row = np.zeros((1, wco_pad), dtype=np.float32)
    bias_row[0, :wco] = np.tile(b, W)

    return (jnp.asarray(B, dtype=jnp.bfloat16),
            jnp.asarray(bias_row, dtype=jnp.float32),
            K, KIN, wco_pad)


# ----------------------------------------------------------------------------
# Shape-specialized executor (one per optimization profile), glue fused under jit
# ----------------------------------------------------------------------------
def _build_engine_executor(engine, x_shape):
    weight = engine["weight"]                         # (C_out, C_in, KH, KW)
    bias = engine["bias"]                             # (C_out,)
    N, C_in, H, W = x_shape
    C_out, C_in_w, KH, KW = np.asarray(weight).shape
    assert C_in == C_in_w, "input channel mismatch"
    pad = (KW - 1) // 2

    w_packed, bias_row, K, KIN, wco_pad = _prepack_engine(weight, bias, W)
    wco = W * C_out

    # Images per grid step: target >=128 M-rows per MXU dot, few large steps on
    # 1-TC chips (v5e/v6e); >=2 steps appear automatically for larger batches (v7x).
    b_img = max(1, min(N, -(-128 // max(H, 1))))
    while N % b_img:
        b_img -= 1
    if (b_img * H) % 8 != 0:
        b_img = N                                     # full-extent block is always legal
    tm = b_img * H
    grid_n = N // b_img

    total_rows = N * H
    flops = 2 * total_rows * K * wco_pad
    bytes_accessed = (total_rows * K * 4              # f32 activations
                      + K * wco_pad * 2               # bf16 weights
                      + wco_pad * 4                   # f32 bias
                      + total_rows * wco_pad * 4)     # f32 output

    conv_call = pl.pallas_call(
        _engine_conv_kernel,
        out_shape=jax.ShapeDtypeStruct((total_rows, wco_pad), jnp.float32),
        grid=(grid_n,),
        in_specs=[
            pl.BlockSpec((tm, K), lambda i: (i, 0)),          # activations: tiled over M
            pl.BlockSpec((K, wco_pad), lambda i: (0, 0)),     # weights: constant block
            pl.BlockSpec((1, wco_pad), lambda i: (0, 0)),     # bias: constant block
        ],
        out_specs=pl.BlockSpec((tm, wco_pad), lambda i: (i, 0)),  # lane-dense stores
        compiler_params=pltpu.CompilerParams(
            dimension_semantics=("parallel",),
            vmem_limit_bytes=32 * 1024 * 1024,
        ),
        cost_estimate=pl.CostEstimate(
            flops=flops, transcendentals=0, bytes_accessed=bytes_accessed),
    )

    @jax.jit
    def run(x, w_pk, b_row):
        # --- layout glue (fused by XLA under this jit) ------------------------
        x_nhwc = jnp.transpose(x, (0, 2, 3, 1))                          # N,H,W,Cin
        xp = jnp.pad(x_nhwc, ((0, 0), (pad, pad), (pad, pad), (0, 0)))   # N,HP,WP,Cin
        xp2d = xp.reshape(N, H + 2 * pad, KIN)                           # N,HP,KIN
        # Fold the KH vertical taps onto the contraction axis: K = KH*KIN.
        lhs = jnp.concatenate([xp2d[:, kh:kh + H, :] for kh in range(KH)],
                              axis=-1)                                   # N,H,K
        lhs = lhs.reshape(total_rows, K)                                 # f32, no lane pad

        # --- Pallas hot path: conv + bias + ReLU ------------------------------
        out2d = conv_call(lhs, w_pk, b_row)                              # (N*H, WCO)

        # --- back to NCHW binding layout --------------------------------------
        out = out2d if wco_pad == wco else out2d[:, :wco]
        out = out.reshape(N, H, W, C_out)
        return jnp.transpose(out, (0, 3, 1, 2))                          # N,Cout,H,W

    return lambda x: run(x, w_packed, bias_row)


# ----------------------------------------------------------------------------
# Synthetic "TensorRT engine" execution: conv3x3 (pad=1) + bias + ReLU
# ----------------------------------------------------------------------------
def _execute_engine(inputs, engine):
    """Mirror of torch.ops.tensorrt.execute_engine(list(inputs), engine)."""
    (x,) = inputs                                      # single input binding, NCHW f32
    cache = engine.setdefault("_executors", {})        # per-shape-profile specialization
    key = (tuple(int(s) for s in x.shape), str(x.dtype))
    if key not in cache:
        cache[key] = _build_engine_executor(engine, x.shape)
    return [cache[key](x)]                             # one output binding


# ----------------------------------------------------------------------------
# TorchTensorRTModule-equivalent wrapper
# ----------------------------------------------------------------------------
class TorchTensorRTModuleJax:
    def __init__(self, name="", input_binding_names=None, output_binding_names=None,
                 engine=None):
        self.name = name
        self.input_binding_names = input_binding_names or []
        self.output_binding_names = output_binding_names or []
        self.engine = engine  # dict of params, stand-in for the TRT engine

    def forward(self, *inputs):
        if self.engine is None:
            raise RuntimeError("Engine has not been initalized yet.")
        assert len(inputs) == len(self.input_binding_names), (
            f"Wrong number of inputs, expected {len(self.input_binding_names)} "
            f"got {len(inputs)}.")
        types = [isinstance(i, (jnp.ndarray, jax.Array)) for i in inputs]
        if not all(types):
            non_tensors = [i for i, ok in zip(inputs, types) if not ok]
            raise RuntimeError(
                f"TorchTensorRTModule expects a flattened list of tensors as "
                f"input, found non tensors: {non_tensors}")
        outputs = _execute_engine(list(inputs), self.engine)
        return outputs[0] if len(outputs) == 1 else tuple(outputs)

    __call__ = forward


# ----------------------------------------------------------------------------
# main
# ----------------------------------------------------------------------------
if __name__ == "__main__":
    key = jax.random.PRNGKey(0)
    k_x, k_w, k_b = jax.random.split(key, 3)

    N, C_in, H, W = 2, 4, 16, 16
    C_out, KH, KW = 8, 3, 3

    x = jax.random.normal(k_x, (N, C_in, H, W), dtype=jnp.float32)
    weight = jax.random.normal(k_w, (C_out, C_in, KH, KW), dtype=jnp.float32) * 0.1
    bias = jax.random.normal(k_b, (C_out,), dtype=jnp.float32) * 0.1

    trt_module = TorchTensorRTModuleJax(
        name="my_module",
        input_binding_names=["x.0"],
        output_binding_names=["y.0"],
        engine={"weight": weight, "bias": bias},
    )

    y = jax.block_until_ready(trt_module(x))

    # Cross-check against XLA's conv using the same bf16 rounding of x/weight
    # that the kernel feeds the MXU (accumulation is f32 in both paths).
    x_r = x.astype(jnp.bfloat16).astype(jnp.float32)
    w_r = weight.astype(jnp.bfloat16).astype(jnp.float32)
    ref = jax.lax.conv_general_dilated(
        x_r, w_r, window_strides=(1, 1), padding=((1, 1), (1, 1)),
        dimension_numbers=("NCHW", "OIHW", "NCHW"))
    ref = jnp.maximum(ref + bias.reshape(1, C_out, 1, 1), 0.0)

    assert y.shape == (N, C_out, H, W)
    err = float(jnp.max(jnp.abs(y - ref)))
    assert err < 1e-3, f"max abs error {err}"

    print("KERNEL_OK")
</pallas_src>

<mosaic_0001>
module attributes {stable_mosaic.version = 11 : i64} {
  func.func @_engine_conv_kernel(%arg0: i32, %arg1: memref<32x216xf32, #tpu.memory_space<vmem>>, %arg2: memref<216x128xbf16, #tpu.memory_space<vmem>>, %arg3: memref<1x128xf32, #tpu.memory_space<vmem>>, %arg4: memref<32x128xf32, #tpu.memory_space<vmem>>) attributes {dimension_semantics = [#tpu.dimension_semantics<parallel>], iteration_bounds = array<i64: 1>, scalar_prefetch = 0 : i64, scratch_operands = 0 : i64, tpu.core_type = #tpu.core_type<tc>, window_params = [{transform_indices = @transform_0, window_bounds = array<i64: 32, 216>}, {pipeline_mode = #tpu.pipeline_mode<synchronous>, transform_indices = @transform_1, window_bounds = array<i64: 216, 128>}, {pipeline_mode = #tpu.pipeline_mode<synchronous>, transform_indices = @transform_2, window_bounds = array<i64: 1, 128>}, {transform_indices = @transform_3, window_bounds = array<i64: 32, 128>}]} {
    %c0 = arith.constant 0 : index
    %c0_0 = arith.constant 0 : index
    %0 = vector.load %arg1[%c0, %c0_0] : memref<32x216xf32, #tpu.memory_space<vmem>>, vector<32x216xf32>
    %1 = arith.truncf %0 : vector<32x216xf32> to vector<32x216xbf16>
    %c0_1 = arith.constant 0 : index
    %c0_2 = arith.constant 0 : index
    %2 = vector.load %arg2[%c0_1, %c0_2] : memref<216x128xbf16, #tpu.memory_space<vmem>>, vector<216x128xbf16>
    %cst = arith.constant dense<0.000000e+00> : vector<32x128xf32>
    %3 = tpu.matmul %1, %2, %cst {dimension_numbers = #tpu.dot_dimension_numbers<[1], [0], [0], [1], [0, 0, 1, 1], [], []>} : vector<32x216xbf16>, vector<216x128xbf16>, vector<32x128xf32> -> vector<32x128xf32>
    %c0_3 = arith.constant 0 : index
    %c0_4 = arith.constant 0 : index
    %4 = vector.load %arg3[%c0_3, %c0_4] : memref<1x128xf32, #tpu.memory_space<vmem>>, vector<1x128xf32>
    %5 = vector.broadcast %4 : vector<1x128xf32> to vector<32x128xf32>
    %6 = arith.addf %3, %5 : vector<32x128xf32>
    %cst_5 = arith.constant 0.000000e+00 : f32
    %7 = vector.broadcast %cst_5 : f32 to vector<32x128xf32>
    %8 = arith.maximumf %6, %7 : vector<32x128xf32>
    %c0_6 = arith.constant 0 : index
    %c0_7 = arith.constant 0 : index
    %9 = vector.load %arg4[%c0_6, %c0_7] : memref<32x128xf32, #tpu.memory_space<vmem>>, vector<32x128xf32>
    tpu.vector_store %arg4[%c0_6, %c0_7], %8 {strides = array<i32>} : memref<32x128xf32, #tpu.memory_space<vmem>>, vector<32x128xf32>,
    return
  }
  func.func @transform_0(%arg0: i32) -> (i32, i32) {
    %c0_i32 = arith.constant 0 : i32
    %c0_i32_0 = arith.constant 0 : i32
    return %arg0, %c0_i32 : i32, i32
  }
  func.func @transform_1(%arg0: i32) -> (i32, i32) {
    %c0_i32 = arith.constant 0 : i32
    %c0_i32_0 = arith.constant 0 : i32
    %c0_i32_1 = arith.constant 0 : i32
    return %c0_i32, %c0_i32_0 : i32, i32
  }
  func.func @transform_2(%arg0: i32) -> (i32, i32) {
    %c0_i32 = arith.constant 0 : i32
    %c0_i32_0 = arith.constant 0 : i32
    %c0_i32_1 = arith.constant 0 : i32
    return %c0_i32, %c0_i32_0 : i32, i32
  }
  func.func @transform_3(%arg0: i32) -> (i32, i32) {
    %c0_i32 = arith.constant 0 : i32
    %c0_i32_0 = arith.constant 0 : i32
    return %arg0, %c0_i32 : i32, i32
  }
}

</mosaic_0001>

<llo_original>
// kernel: run.1
$region0: #{run.1}
  #allocation0 [shape = 'u32[]', space=smem, size = 0x4, offset = 0x4, fixed_abs, tag = 'smem constant byte address 0x4 - core index']
  #allocation1 [shape = 'u32[72,128]{1,0:T(1,128)}', space=vmem, size = 0x9000, scoped, tag = 'internal scratch']
  %s0 = inlined_call_operand.vmem [shape: f32[32,216], index: 0, kind: input, shape index: {}]
  %s1 = inlined_call_operand.vmem [shape: bf16[216,128], index: 1, kind: input, shape index: {}]
  %s2 = inlined_call_operand.vmem [shape: f32[1,128], index: 2, kind: input, shape index: {}]
  %s3 = inlined_call_operand.vmem [shape: f32[32,128], index: 3, kind: output, shape index: {}]
  %s4 = sld [smem:[#allocation0]]
  $region22: #{run.1} parent=0
    _
  %s6 = ssub.s32 1, %s4
  %s7 = scalar_select 0, %s6, %s4
  // Predicated region
  $region2: #{run.1} parent=0 // pred_check
    _
  $region3: #{run.1} parent=0 // pred_check_branch
    %9 = sbr.rel (0) target = $region5
  $region4: #{run.1} parent=0 // pred_region
    _
  $region5: #{run.1} parent=0 // pred_fallthru
    _
  // Predicated region
  $region6: #{run.1} parent=0 // pred_check
    _
  $region7: #{run.1} parent=0 // pred_check_branch
    %11 = sbr.rel (0) target = $region9
  $region8: #{run.1} parent=0 // pred_region
    _
  $region9: #{run.1} parent=0 // pred_fallthru
    _
  // Predicated region
  $region10: #{run.1} parent=0 // pred_check
    _
  $region11: #{run.1} parent=0 // pred_check_branch
    %13 = sbr.rel (0) target = $region13
  $region12: #{run.1} parent=0 // pred_region
    _
  $region13: #{run.1} parent=0 // pred_fallthru
    _
  %v15 = vld [vmem:[%s0] sm:$0xff]
  %v16 = vld [vmem:[%s0 + $0x8] sm:$0xff]
  %v17 = vld [vmem:[%s0 + $0x10] sm:$0xff]
  %v18 = vld [vmem:[%s0 + $0x18] sm:$0xff]
  %v19 = vld [vmem:[%s0 + $0x20] sm:$0xff]
  %v20 = vld [vmem:[%s0 + $0x28] sm:$0xff]
  %v21 = vld [vmem:[%s0 + $0x30] sm:$0xff]
  %v22 = vld [vmem:[%s0 + $0x38] sm:$0xff]
  %v23 = vpack.c.bf16 %v17, %v15
  %v24 = vpack.c.bf16 %v18, %v16
  %v25 = vpack.c.bf16 %v21, %v19
  %v26 = vpack.c.bf16 %v22, %v20
  %v27 = vld [vmem:[%s1] sm:$0xf]
  %v28 = vld [vmem:[%s1 + $0x4] sm:$0xf]
  %v29 = vld [vmem:[%s1 + $0x8] sm:$0xf]
  %v30 = vld [vmem:[%s1 + $0xc] sm:$0xf]
  %v31 = vld [vmem:[%s1 + $0x10] sm:$0xf]
  %v32 = vld [vmem:[%s1 + $0x14] sm:$0xf]
  %v33 = vld [vmem:[%s1 + $0x18] sm:$0xf]
  %v34 = vld [vmem:[%s1 + $0x1c] sm:$0xf]
  %v35 = vld [vmem:[%s1 + $0x20] sm:$0xf]
  %v36 = vld [vmem:[%s1 + $0x24] sm:$0xf]
  %v37 = vld [vmem:[%s1 + $0x28] sm:$0xf]
  %v38 = vld [vmem:[%s1 + $0x2c] sm:$0xf]
  %v39 = vld [vmem:[%s1 + $0x30] sm:$0xf]
  %v40 = vld [vmem:[%s1 + $0x34] sm:$0xf]
  %v41 = vld [vmem:[%s1 + $0x38] sm:$0xf]
  %v42 = vld [vmem:[%s1 + $0x3c] sm:$0xf]
  %v43 = vld [vmem:[%s1 + $0x40] sm:$0xf]
  %v44 = vld [vmem:[%s1 + $0x44] sm:$0xf]
  %v45 = vld [vmem:[%s1 + $0x48] sm:$0xf]
  %v46 = vld [vmem:[%s1 + $0x4c] sm:$0xf]
  %v47 = vld [vmem:[%s1 + $0x50] sm:$0xf]
  %v48 = vld [vmem:[%s1 + $0x54] sm:$0xf]
  %v49 = vld [vmem:[%s1 + $0x58] sm:$0xf]
  %v50 = vld [vmem:[%s1 + $0x5c] sm:$0xf]
  %v51 = vld [vmem:[%s1 + $0x60] sm:$0xf]
  %v52 = vld [vmem:[%s1 + $0x64] sm:$0xf]
  %v53 = vld [vmem:[%s1 + $0x68] sm:$0xf]
  %v54 = vld [vmem:[%s2] sm:$0x1]
  %v56 = vperm.slane %v54, 0
  %v85 = vunpack.c.l.b16 %v27
  %v86 = vunpack.c.l.b16 %v28
  %v87 = vunpack.c.l.b16 %v29
  %v88 = vunpack.c.l.b16 %v30
  %v89 = vunpack.c.l.b16 %v31
  %v90 = vunpack.c.l.b16 %v32
  %v91 = vunpack.c.l.b16 %v33
  %v92 = vunpack.c.l.b16 %v34
  %v93 = vunpack.c.l.b16 %v35
  %v94 = vunpack.c.l.b16 %v36
  %v95 = vunpack.c.l.b16 %v37
  %v96 = vunpack.c.l.b16 %v38
  %v97 = vunpack.c.l.b16 %v39
  %v98 = vunpack.c.l.b16 %v40
  %v99 = vunpack.c.l.b16 %v41
  %v100 = vunpack.c.l.b16 %v42
  %v101 = vunpack.c.l.b16 %v43
  %v102 = vunpack.c.l.b16 %v44
  %v103 = vunpack.c.l.b16 %v45
  %v104 = vunpack.c.l.b16 %v46
  %v105 = vunpack.c.l.b16 %v47
  %v106 = vunpack.c.l.b16 %v48
  %v107 = vunpack.c.l.b16 %v49
  %v108 = vunpack.c.l.b16 %v50
  %v109 = vunpack.c.l.b16 %v51
  %v110 = vunpack.c.l.b16 %v52
  %v111 = vunpack.c.l.b16 %v53
  %v112 = vpack.c.b16 %v86, %v85
  %v113 = vpack.c.b16 %v88, %v87
  %v114 = vpack.c.b16 %v90, %v89
  %v115 = vpack.c.b16 %v92, %v91
  %v116 = vpack.c.b16 %v94, %v93
  %v117 = vpack.c.b16 %v96, %v95
  %v118 = vpack.c.b16 %v98, %v97
  %v119 = vpack.c.b16 %v100, %v99
  %v120 = vpack.c.b16 %v102, %v101
  %v121 = vpack.c.b16 %v104, %v103
  %v122 = vpack.c.b16 %v106, %v105
  %v123 = vpack.c.b16 %v108, %v107
  %v124 = vpack.c.b16 %v110, %v109
  %v125 = vpack.c.b16 %v111, %v111
  %vm139 = vcmask 719872
  %v141 = vsel %vm139, %v24, 0
  %v144 = vsel %vm139, %v26, 0
  %vm146 = vcmask 1043456
  %v148 = vsel %vm146, %v125, 0
  %150 = vmatpush.bf16.msra.mxu0 %v119
  %151 = vmatpush.bf16.msra.mxu0 %v118
  %152 = vmatpush.bf16.msra.mxu0 %v117
  %153 = vmatpush.bf16.msra.mxu0 %v116
  %154 = vmatpush.bf16.msra.mxu0 %v115
  %155 = vmatpush.bf16.msra.mxu0 %v114
  %156 = vmatpush.bf16.msra.mxu0 %v113
  %157 = vmatpush.bf16.msra.mxu0 %v112
  %158 = vmatmul.bf16.gmra.mxu0 %v23
  %v159 = vpop.f32.mrf.mxu0
  %v160 = vadd.f32 %v56, %v159
  %v161 = vpop.f32.mrf.mxu0
  %v162 = vadd.f32 %v56, %v161
  %163 = vmatmul.bf16.gmra.mxu0 %v25
  %v164 = vpop.f32.mrf.mxu0
  %v165 = vadd.f32 %v56, %v164
  %v166 = vpop.f32.mrf.mxu0
  %v167 = vadd.f32 %v56, %v166
  %168 = vdwg.mxu0
  %169 = vmatpush.bf16.msra.mxu0 0
  %170 = vmatpush.bf16.msra.mxu0 0
  %171 = vmatpush.bf16.msra.mxu0 %v148
  %172 = vmatpush.bf16.msra.mxu0 %v124
  %173 = vmatpush.bf16.msra.mxu0 %v123
  %174 = vmatpush.bf16.msra.mxu0 %v122
  %175 = vmatpush.bf16.msra.mxu0 %v121
  %176 = vmatpush.bf16.msra.mxu0 %v120
  %177 = vmatmul.bf16.gmra.mxu0 %v141
  %v178 = vpop.f32.mrf.mxu0
  %v179 = vadd.f32 %v160, %v178
  %v180 = vpop.f32.mrf.mxu0
  %v181 = vadd.f32 %v162, %v180
  %182 = vmatmul.bf16.gmra.mxu0 %v144
  %v183 = vpop.f32.mrf.mxu0
  %v184 = vadd.f32 %v165, %v183
  %v185 = vpop.f32.mrf.mxu0
  %v186 = vadd.f32 %v167, %v185
  %187 = vdwg.mxu0
  %v188 = vmax.f32 %v179, 0.0
  %v189 = vmax.f32 %v181, 0.0
  %v190 = vmax.f32 %v184, 0.0
  %v191 = vmax.f32 %v186, 0.0
  %192 = vst [vmem:[%s3] sm:$0xff] %v188
  %193 = vst [vmem:[%s3 + $0x8] sm:$0xff] %v189
  %194 = vst [vmem:[%s3 + $0x10] sm:$0xff] %v190
  %195 = vst [vmem:[%s3 + $0x18] sm:$0xff] %v191
  // Predicated region
  $region14: #{run.1} parent=0 // pred_check
    _
  $region15: #{run.1} parent=0 // pred_check_branch
    %197 = sbr.rel (0) target = $region17
  $region16: #{run.1} parent=0 // pred_region
    _
  $region17: #{run.1} parent=0 // pred_fallthru
    _
  // Predicated region
  $region18: #{run.1} parent=0 // pred_check
    _
  $region19: #{run.1} parent=0 // pred_check_branch
    %199 = sbr.rel (0) target = $region21
  $region20: #{run.1} parent=0 // pred_region
    _
  $region21: #{run.1} parent=0 // pred_fallthru
    _

</llo_original>
